<compile_context>
chip_gen: v6e
topology: v6e:2x2x1
jax: 0.10.0
libtpu: 0.0.40
codegen_flags: <defaults>
</compile_context>

<pallas_src>
import functools

import jax
import jax.numpy as jnp
from jax import lax
from jax.experimental import pallas as pl
from jax.experimental.pallas import tpu as pltpu


# dot_general dimension numbers contracting the LAST dim of both operands
# (same pattern the reference flash-attention kernel uses for q @ k^T).
_TRANS_RHS = (((1,), (1,)), ((), ()))


def _round_up(x, m):
    return ((x + m - 1) // m) * m


def _fused_double_q_kernel(a_ref, s_ref, w1a_ref, w1s_ref, w2_ref, w3_ref,
                           b_ref, out_ref):
    """One batch tile, transposed layout (features on sublanes, batch on lanes).

      a_ref  : [tb, A]  f32      w1a_ref: [2H, A]  bf16
      s_ref  : [tb, S]  f32      w1s_ref: [2H, S]  bf16
                                 w2_ref : [2H, 2H] bf16 (block-diag, both heads)
                                 w3_ref : [8, 2H]  bf16 (rows 0/1 = head1/head2)
                                 b_ref  : [2H, 3]  f32  (cols: b1 | b2 | b3 pad)
      out_ref: [1, tb]  f32      lane-dense min(Q1, Q2)
    """
    a_bf = a_ref[...].astype(jnp.bfloat16)                       # [tb, A]
    s_bf = s_ref[...].astype(jnp.bfloat16)                       # [tb, S]

    # Layer 1:  h = W1a^T a^T + W1s^T s^T + b1        -> [2H, tb]  (f32 acc)
    h = (lax.dot_general(w1a_ref[...], a_bf, _TRANS_RHS,
                         preferred_element_type=jnp.float32)
         + lax.dot_general(w1s_ref[...], s_bf, _TRANS_RHS,
                           preferred_element_type=jnp.float32)
         + b_ref[:, 0:1])
    h = jnp.maximum(h, 0.0).astype(jnp.bfloat16)

    # Layer 2:  h = W2^T h + b2                       -> [2H, tb]
    h = jnp.dot(w2_ref[...], h, preferred_element_type=jnp.float32) + b_ref[:, 1:2]
    h = jnp.maximum(h, 0.0).astype(jnp.bfloat16)

    # Layer 3:  q = W3^T h + b3   (8 rows, only rows 0/1 meaningful) -> [8, tb]
    q = jnp.dot(w3_ref[...], h, preferred_element_type=jnp.float32) + b_ref[0:8, 2:3]

    # min(Q1, Q2): elementwise min of two sublane rows (VPU), lane-dense store.
    out_ref[...] = jnp.minimum(q[0:1, :], q[1:2, :]).astype(out_ref.dtype)


def pack_double_q_params(params, action_dim):
    """Fuse the two Q heads into one transposed, bf16 weight set.

    Done ONCE per params update (hoisted out of the per-forward path).
    """
    p1, p2 = params["q1"], params["q2"]
    d_in, H = p1["w1"].shape
    A = action_dim
    H2 = 2 * H
    assert H2 >= 8, "hidden_dim must be >= 4"

    def cat_heads(name, rows):
        return jnp.concatenate([p1[name][rows], p2[name][rows]], axis=1)

    # First layer split by input rows (action | state), heads concat on outputs.
    w1a_t = cat_heads("w1", slice(0, A)).T.astype(jnp.bfloat16)       # [2H, A]
    w1s_t = cat_heads("w1", slice(A, d_in)).T.astype(jnp.bfloat16)    # [2H, S]

    # Second layer: block-diagonal (heads independent), transposed.
    w2_t = jnp.zeros((H2, H2), jnp.float32)
    w2_t = w2_t.at[:H, :H].set(p1["w2"].T).at[H:, H:].set(p2["w2"].T)
    w2_t = w2_t.astype(jnp.bfloat16)                                   # [2H, 2H]

    # Third layer: rows 0/1 hold the two heads, rows 2..7 zero (MXU-friendly).
    w3_t = jnp.zeros((8, H2), jnp.float32)
    w3_t = w3_t.at[0, :H].set(p1["w3"][:, 0]).at[1, H:].set(p2["w3"][:, 0])
    w3_t = w3_t.astype(jnp.bfloat16)                                   # [8, 2H]

    # Biases packed as columns (kept f32 for the VPU adds).
    bias = jnp.zeros((H2, 3), jnp.float32)
    bias = bias.at[:, 0].set(jnp.concatenate([p1["b1"][0], p2["b1"][0]]))
    bias = bias.at[:, 1].set(jnp.concatenate([p1["b2"][0], p2["b2"][0]]))
    bias = bias.at[0, 2].set(p1["b3"][0, 0]).at[1, 2].set(p2["b3"][0, 0])

    return {"w1a": w1a_t, "w1s": w1s_t, "w2": w2_t, "w3": w3_t, "bias": bias}


def gpo_critic_forward(action, state, packed, *, block_b=4096):
    """min(Q1, Q2) for (action, state). Returns [B, 1] float32."""
    action = action.astype(jnp.float32)
    state = state.astype(jnp.float32)
    B, A = action.shape
    S = state.shape[1]
    H2 = packed["w2"].shape[0]

    # Batch tile: big tiles (grid-step overhead ~0.35us each); for large B make
    # sure there are >= 2 grid steps so "parallel" shards across v7x's two TCs;
    # lane-dense output tiles are multiples of 128.
    if B <= 128:
        tb = _round_up(max(B, 1), 8)
    else:
        tb = min(block_b, _round_up(pl.cdiv(B, 2), 128))
    n_steps = pl.cdiv(B, tb)
    Bp = n_steps * tb
    if Bp != B:  # skip the pad entirely when B already fits the tiling
        action = jnp.pad(action, ((0, Bp - B), (0, 0)))
        state = jnp.pad(state, ((0, Bp - B), (0, 0)))

    flops = 2 * Bp * (A * H2 + S * H2 + H2 * H2 + H2 * 8)
    bytes_accessed = (4 * Bp * (A + S) + 4 * Bp                       # acts + out
                      + 2 * ((A + S) * H2 + H2 * H2 + 8 * H2)          # bf16 weights
                      + 4 * 3 * H2)                                    # f32 biases

    const = lambda i: (0, 0)   # weights/biases: VMEM-resident across the grid
    out = pl.pallas_call(
        _fused_double_q_kernel,
        out_shape=jax.ShapeDtypeStruct((1, Bp), jnp.float32),
        grid=(n_steps,),
        in_specs=[
            pl.BlockSpec((tb, A), lambda i: (i, 0)),   # action, batch-tiled
            pl.BlockSpec((tb, S), lambda i: (i, 0)),   # state, batch-tiled
            pl.BlockSpec((H2, A), const),
            pl.BlockSpec((H2, S), const),
            pl.BlockSpec((H2, H2), const),
            pl.BlockSpec((8, H2), const),
            pl.BlockSpec((H2, 3), const),
        ],
        out_specs=pl.BlockSpec((1, tb), lambda i: (0, i)),  # lane-dense output
        compiler_params=pltpu.CompilerParams(
            dimension_semantics=("parallel",),              # megacore on v7x
            vmem_limit_bytes=32 * 1024 * 1024,
        ),
        cost_estimate=pl.CostEstimate(
            flops=flops, transcendentals=0, bytes_accessed=bytes_accessed),
    )(action, state, packed["w1a"], packed["w1s"], packed["w2"], packed["w3"],
      packed["bias"])

    return out[0, :B].reshape(B, 1)


def init_params(key, action_dim, state_dim, hidden_dim):
    """Deterministic synthetic weights (two independent Q heads), f32."""
    d_in = action_dim + state_dim
    params = {}
    for i, head in enumerate(("q1", "q2")):
        k = jax.random.fold_in(key, i)
        k1, k2, k3 = jax.random.split(k, 3)
        params[head] = {
            "w1": 0.1 * jax.random.normal(k1, (d_in, hidden_dim), jnp.float32),
            "b1": 0.01 * jnp.ones((1, hidden_dim), jnp.float32),
            "w2": 0.1 * jax.random.normal(k2, (hidden_dim, hidden_dim), jnp.float32),
            "b2": 0.01 * jnp.ones((1, hidden_dim), jnp.float32),
            "w3": 0.1 * jax.random.normal(k3, (hidden_dim, 1), jnp.float32),
            "b3": 0.01 * jnp.ones((1, 1), jnp.float32),
        }
    return params


if __name__ == "__main__":
    # Small shapes consistent with the module's forward: flat action/state vectors.
    B, A_DIM, S_DIM, HIDDEN = 8, 8, 24, 32

    key = jax.random.PRNGKey(0)
    ka, ks, kw = jax.random.split(key, 3)
    action = jax.random.normal(ka, (B, A_DIM), jnp.float32)
    state = jax.random.normal(ks, (B, S_DIM), jnp.float32)
    params = init_params(kw, A_DIM, S_DIM, HIDDEN)

    # Fuse/pack the two heads ONCE (not per forward call).
    packed = pack_double_q_params(params, A_DIM)
    critic = jax.jit(functools.partial(gpo_critic_forward, block_b=4096))

    q = critic(action, state, packed)
    jax.block_until_ready(q)

    # Pure-JAX f32 reference (unfused two-head math).
    x = jnp.concatenate([action, state], axis=-1)

    def ref_mlp(p):
        h = jnp.maximum(x @ p["w1"] + p["b1"], 0.0)
        h = jnp.maximum(h @ p["w2"] + p["b2"], 0.0)
        return h @ p["w3"] + p["b3"]

    q_ref = jnp.minimum(ref_mlp(params["q1"]), ref_mlp(params["q2"]))

    assert q.shape == (B, 1)
    # bf16 MXU operands with f32 accumulation -> loosened tolerance vs f32 ref.
    assert jnp.allclose(q, q_ref, atol=3e-2, rtol=3e-2), (q, q_ref)

    print("KERNEL_OK")
</pallas_src>

<mosaic_0001>
module attributes {stable_mosaic.version = 11 : i64} {
  func.func @_fused_double_q_kernel(%arg0: i32, %arg1: memref<8x8xf32, #tpu.memory_space<vmem>>, %arg2: memref<8x24xf32, #tpu.memory_space<vmem>>, %arg3: memref<64x8xbf16, #tpu.memory_space<vmem>>, %arg4: memref<64x24xbf16, #tpu.memory_space<vmem>>, %arg5: memref<64x64xbf16, #tpu.memory_space<vmem>>, %arg6: memref<8x64xbf16, #tpu.memory_space<vmem>>, %arg7: memref<64x3xf32, #tpu.memory_space<vmem>>, %arg8: memref<1x8xf32, #tpu.memory_space<vmem>>) attributes {dimension_semantics = [#tpu.dimension_semantics<parallel>], iteration_bounds = array<i64: 1>, scalar_prefetch = 0 : i64, scratch_operands = 0 : i64, tpu.core_type = #tpu.core_type<tc>, window_params = [{transform_indices = @transform_0, window_bounds = array<i64: 8, 8>}, {transform_indices = @transform_1, window_bounds = array<i64: 8, 24>}, {pipeline_mode = #tpu.pipeline_mode<synchronous>, transform_indices = @transform_2, window_bounds = array<i64: 64, 8>}, {pipeline_mode = #tpu.pipeline_mode<synchronous>, transform_indices = @transform_3, window_bounds = array<i64: 64, 24>}, {pipeline_mode = #tpu.pipeline_mode<synchronous>, transform_indices = @transform_4, window_bounds = array<i64: 64, 64>}, {pipeline_mode = #tpu.pipeline_mode<synchronous>, transform_indices = @transform_5, window_bounds = array<i64: 8, 64>}, {pipeline_mode = #tpu.pipeline_mode<synchronous>, transform_indices = @transform_6, window_bounds = array<i64: 64, 3>}, {transform_indices = @transform_7, window_bounds = array<i64: 1, 8>}]} {
    %c0 = arith.constant 0 : index
    %c0_0 = arith.constant 0 : index
    %0 = vector.load %arg1[%c0, %c0_0] : memref<8x8xf32, #tpu.memory_space<vmem>>, vector<8x8xf32>
    %1 = arith.truncf %0 : vector<8x8xf32> to vector<8x8xbf16>
    %c0_1 = arith.constant 0 : index
    %c0_2 = arith.constant 0 : index
    %2 = vector.load %arg2[%c0_1, %c0_2] : memref<8x24xf32, #tpu.memory_space<vmem>>, vector<8x24xf32>
    %3 = arith.truncf %2 : vector<8x24xf32> to vector<8x24xbf16>
    %c0_3 = arith.constant 0 : index
    %c0_4 = arith.constant 0 : index
    %4 = vector.load %arg3[%c0_3, %c0_4] : memref<64x8xbf16, #tpu.memory_space<vmem>>, vector<64x8xbf16>
    %cst = arith.constant dense<0.000000e+00> : vector<64x8xf32>
    %5 = tpu.matmul %4, %1, %cst {dimension_numbers = #tpu.dot_dimension_numbers<[1], [1], [0], [0], [0, 0, 1, 0], [], []>} : vector<64x8xbf16>, vector<8x8xbf16>, vector<64x8xf32> -> vector<64x8xf32>
    %c0_5 = arith.constant 0 : index
    %c0_6 = arith.constant 0 : index
    %6 = vector.load %arg4[%c0_5, %c0_6] : memref<64x24xbf16, #tpu.memory_space<vmem>>, vector<64x24xbf16>
    %cst_7 = arith.constant dense<0.000000e+00> : vector<64x8xf32>
    %7 = tpu.matmul %6, %3, %cst_7 {dimension_numbers = #tpu.dot_dimension_numbers<[1], [1], [0], [0], [0, 0, 1, 0], [], []>} : vector<64x24xbf16>, vector<8x24xbf16>, vector<64x8xf32> -> vector<64x8xf32>
    %8 = arith.addf %5, %7 : vector<64x8xf32>
    %c0_8 = arith.constant 0 : index
    %c0_9 = arith.constant 0 : index
    %9 = vector.load %arg7[%c0_8, %c0_9] : memref<64x3xf32, #tpu.memory_space<vmem>>, vector<64x1xf32>
    %10 = vector.broadcast %9 : vector<64x1xf32> to vector<64x8xf32>
    %11 = arith.addf %8, %10 : vector<64x8xf32>
    %cst_10 = arith.constant 0.000000e+00 : f32
    %12 = vector.broadcast %cst_10 : f32 to vector<64x8xf32>
    %13 = arith.maximumf %11, %12 : vector<64x8xf32>
    %14 = arith.truncf %13 : vector<64x8xf32> to vector<64x8xbf16>
    %c0_11 = arith.constant 0 : index
    %c0_12 = arith.constant 0 : index
    %15 = vector.load %arg5[%c0_11, %c0_12] : memref<64x64xbf16, #tpu.memory_space<vmem>>, vector<64x64xbf16>
    %cst_13 = arith.constant dense<0.000000e+00> : vector<64x8xf32>
    %16 = tpu.matmul %15, %14, %cst_13 {dimension_numbers = #tpu.dot_dimension_numbers<[1], [0], [0], [1], [0, 0, 1, 1], [], []>} : vector<64x64xbf16>, vector<64x8xbf16>, vector<64x8xf32> -> vector<64x8xf32>
    %c0_14 = arith.constant 0 : index
    %c1 = arith.constant 1 : index
    %17 = vector.load %arg7[%c0_14, %c1] : memref<64x3xf32, #tpu.memory_space<vmem>>, vector<64x1xf32>
    %18 = vector.broadcast %17 : vector<64x1xf32> to vector<64x8xf32>
    %19 = arith.addf %16, %18 : vector<64x8xf32>
    %cst_15 = arith.constant 0.000000e+00 : f32
    %20 = vector.broadcast %cst_15 : f32 to vector<64x8xf32>
    %21 = arith.maximumf %19, %20 : vector<64x8xf32>
    %22 = arith.truncf %21 : vector<64x8xf32> to vector<64x8xbf16>
    %c0_16 = arith.constant 0 : index
    %c0_17 = arith.constant 0 : index
    %23 = vector.load %arg6[%c0_16, %c0_17] : memref<8x64xbf16, #tpu.memory_space<vmem>>, vector<8x64xbf16>
    %cst_18 = arith.constant dense<0.000000e+00> : vector<8x8xf32>
    %24 = tpu.matmul %23, %22, %cst_18 {dimension_numbers = #tpu.dot_dimension_numbers<[1], [0], [0], [1], [0, 0, 1, 1], [], []>} : vector<8x64xbf16>, vector<64x8xbf16>, vector<8x8xf32> -> vector<8x8xf32>
    %c0_19 = arith.constant 0 : index
    %c2 = arith.constant 2 : index
    %25 = vector.load %arg7[%c0_19, %c2] : memref<64x3xf32, #tpu.memory_space<vmem>>, vector<8x1xf32>
    %26 = vector.broadcast %25 : vector<8x1xf32> to vector<8x8xf32>
    %27 = arith.addf %24, %26 : vector<8x8xf32>
    %28 = vector.extract_strided_slice %27 {offsets = [0, 0], sizes = [1, 8], strides = [1, 1]} : vector<8x8xf32> to vector<1x8xf32>
    %29 = vector.extract_strided_slice %27 {offsets = [1, 0], sizes = [1, 8], strides = [1, 1]} : vector<8x8xf32> to vector<1x8xf32>
    %30 = arith.minimumf %28, %29 : vector<1x8xf32>
    %c0_20 = arith.constant 0 : index
    %c0_21 = arith.constant 0 : index
    %31 = vector.load %arg8[%c0_20, %c0_21] : memref<1x8xf32, #tpu.memory_space<vmem>>, vector<1x8xf32>
    tpu.vector_store %arg8[%c0_20, %c0_21], %30 {strides = array<i32>} : memref<1x8xf32, #tpu.memory_space<vmem>>, vector<1x8xf32>,
    return
  }
  func.func @transform_0(%arg0: i32) -> (i32, i32) {
    %c0_i32 = arith.constant 0 : i32
    %c0_i32_0 = arith.constant 0 : i32
    return %arg0, %c0_i32 : i32, i32
  }
  func.func @transform_1(%arg0: i32) -> (i32, i32) {
    %c0_i32 = arith.constant 0 : i32
    %c0_i32_0 = arith.constant 0 : i32
    return %arg0, %c0_i32 : i32, i32
  }
  func.func @transform_2(%arg0: i32) -> (i32, i32) {
    %c0_i32 = arith.constant 0 : i32
    %c0_i32_0 = arith.constant 0 : i32
    %c0_i32_1 = arith.constant 0 : i32
    return %c0_i32, %c0_i32_0 : i32, i32
  }
  func.func @transform_3(%arg0: i32) -> (i32, i32) {
    %c0_i32 = arith.constant 0 : i32
    %c0_i32_0 = arith.constant 0 : i32
    %c0_i32_1 = arith.constant 0 : i32
    return %c0_i32, %c0_i32_0 : i32, i32
  }
  func.func @transform_4(%arg0: i32) -> (i32, i32) {
    %c0_i32 = arith.constant 0 : i32
    %c0_i32_0 = arith.constant 0 : i32
    %c0_i32_1 = arith.constant 0 : i32
    return %c0_i32, %c0_i32_0 : i32, i32
  }
  func.func @transform_5(%arg0: i32) -> (i32, i32) {
    %c0_i32 = arith.constant 0 : i32
    %c0_i32_0 = arith.constant 0 : i32
    %c0_i32_1 = arith.constant 0 : i32
    return %c0_i32, %c0_i32_0 : i32, i32
  }
  func.func @transform_6(%arg0: i32) -> (i32, i32) {
    %c0_i32 = arith.constant 0 : i32
    %c0_i32_0 = arith.constant 0 : i32
    %c0_i32_1 = arith.constant 0 : i32
    return %c0_i32, %c0_i32_0 : i32, i32
  }
  func.func @transform_7(%arg0: i32) -> (i32, i32) {
    %c0_i32 = arith.constant 0 : i32
    %c0_i32_0 = arith.constant 0 : i32
    return %c0_i32, %arg0 : i32, i32
  }
}

</mosaic_0001>

<llo_original>
// kernel: gpo_critic_forward.1
$region0: #{gpo_critic_forward.1}
  #allocation0 [shape = 'u32[]', space=smem, size = 0x4, offset = 0x4, fixed_abs, tag = 'smem constant byte address 0x4 - core index']
  #allocation1 [shape = 'u32[144,128]{1,0:T(1,128)}', space=vmem, size = 0x12000, scoped, tag = 'internal scratch']
  %s0 = inlined_call_operand.vmem [shape: f32[8,8], index: 0, kind: input, shape index: {}]
  %s1 = inlined_call_operand.vmem [shape: f32[8,24], index: 1, kind: input, shape index: {}]
  %s2 = inlined_call_operand.vmem [shape: bf16[64,8], index: 2, kind: input, shape index: {}]
  %s3 = inlined_call_operand.vmem [shape: bf16[64,24], index: 3, kind: input, shape index: {}]
  %s4 = inlined_call_operand.vmem [shape: bf16[64,64], index: 4, kind: input, shape index: {}]
  %s5 = inlined_call_operand.vmem [shape: bf16[8,64], index: 5, kind: input, shape index: {}]
  %s6 = inlined_call_operand.vmem [shape: f32[64,3], index: 6, kind: input, shape index: {}]
  %s7 = inlined_call_operand.hbm [shape: f32[1,8], index: 7, kind: output, shape index: {}]
  %s8 = sld [smem:[#allocation0]]
  $region38: #{gpo_critic_forward.1} parent=0
    _
  %s10 = ssub.s32 1, %s8
  %s11 = scalar_select 0, %s10, %s8
  $region1: #{gpo_critic_forward.1} parent=0
    #allocation2 [shape = 'u8[512]{0}', space=vmem, size = 0x400, scoped, tag = 'output window, operand 0, single buffered']
    #allocation3 [shape = 's32[1]{0}', space=sflag, size = 0x4, scoped, tag = 'scoped memory for gpo_critic_forward.1']
    %12 = vsyncpa [#allocation3], 0
    // Predicated region
    $region2: #{gpo_critic_forward.1} parent=1 // pred_check
      _
    $region3: #{gpo_critic_forward.1} parent=1 // pred_check_branch
      %14 = sbr.rel (0) target = $region5
    $region4: #{gpo_critic_forward.1} parent=1 // pred_region
      _
    $region5: #{gpo_critic_forward.1} parent=1 // pred_fallthru
      _
    // Predicated region
    $region6: #{gpo_critic_forward.1} parent=1 // pred_check
      _
    $region7: #{gpo_critic_forward.1} parent=1 // pred_check_branch
      %16 = sbr.rel (0) target = $region9
    $region8: #{gpo_critic_forward.1} parent=1 // pred_region
      _
    $region9: #{gpo_critic_forward.1} parent=1 // pred_fallthru
      _
    // Predicated region
    $region10: #{gpo_critic_forward.1} parent=1 // pred_check
      _
    $region11: #{gpo_critic_forward.1} parent=1 // pred_check_branch
      %18 = sbr.rel (0) target = $region13
    $region12: #{gpo_critic_forward.1} parent=1 // pred_region
      _
    $region13: #{gpo_critic_forward.1} parent=1 // pred_fallthru
      _
    // Predicated region
    $region14: #{gpo_critic_forward.1} parent=1 // pred_check
      _
    $region15: #{gpo_critic_forward.1} parent=1 // pred_check_branch
      %20 = sbr.rel (0) target = $region17
    $region16: #{gpo_critic_forward.1} parent=1 // pred_region
      _
    $region17: #{gpo_critic_forward.1} parent=1 // pred_fallthru
      _
    // Predicated region
    $region18: #{gpo_critic_forward.1} parent=1 // pred_check
      _
    $region19: #{gpo_critic_forward.1} parent=1 // pred_check_branch
      %22 = sbr.rel (0) target = $region21
    $region20: #{gpo_critic_forward.1} parent=1 // pred_region
      _
    $region21: #{gpo_critic_forward.1} parent=1 // pred_fallthru
      _
    // Predicated region
    $region22: #{gpo_critic_forward.1} parent=1 // pred_check
      _
    $region23: #{gpo_critic_forward.1} parent=1 // pred_check_branch
      %24 = sbr.rel (0) target = $region25
    $region24: #{gpo_critic_forward.1} parent=1 // pred_region
      _
    $region25: #{gpo_critic_forward.1} parent=1 // pred_fallthru
      _
    // Predicated region
    $region26: #{gpo_critic_forward.1} parent=1 // pred_check
      _
    $region27: #{gpo_critic_forward.1} parent=1 // pred_check_branch
      %26 = sbr.rel (0) target = $region29
    $region28: #{gpo_critic_forward.1} parent=1 // pred_region
      _
    $region29: #{gpo_critic_forward.1} parent=1 // pred_fallthru
      _
    %v28 = vld [vmem:[%s0] sm:$0xff]
    %v29 = vpack.c.bf16 %v28, %v28
    %v30 = vld [vmem:[%s1] sm:$0xff]
    %v31 = vpack.c.bf16 %v30, %v30
    %v32 = vld [vmem:[%s2] sm:$0xf]
    %v33 = vld [vmem:[%s2 + $0x4] sm:$0xf]
    %v34 = vld [vmem:[%s2 + $0x8] sm:$0xf]
    %v35 = vld [vmem:[%s2 + $0xc] sm:$0xf]
    %v36 = vld [vmem:[%s2 + $0x10] sm:$0xf]
    %v37 = vld [vmem:[%s2 + $0x14] sm:$0xf]
    %v38 = vld [vmem:[%s2 + $0x18] sm:$0xf]
    %v39 = vld [vmem:[%s2 + $0x1c] sm:$0xf]
    %v40 = vld [vmem:[%s3] sm:$0xf]
    %v41 = vld [vmem:[%s3 + $0x4] sm:$0xf]
    %v42 = vld [vmem:[%s3 + $0x8] sm:$0xf]
    %v43 = vld [vmem:[%s3 + $0xc] sm:$0xf]
    %v44 = vld [vmem:[%s3 + $0x10] sm:$0xf]
    %v45 = vld [vmem:[%s3 + $0x14] sm:$0xf]
    %v46 = vld [vmem:[%s3 + $0x18] sm:$0xf]
    %v47 = vld [vmem:[%s3 + $0x1c] sm:$0xf]
    %v56 = vunpack.c.l.b16 %v40
    %v57 = vunpack.c.l.b16 %v41
    %v58 = vunpack.c.l.b16 %v42
    %v59 = vunpack.c.l.b16 %v43
    %v60 = vunpack.c.l.b16 %v44
    %v61 = vunpack.c.l.b16 %v45
    %v62 = vunpack.c.l.b16 %v46
    %v63 = vunpack.c.l.b16 %v47
    %v64 = vpack.c.b16 %v57, %v56
    %v65 = vpack.c.b16 %v59, %v58
    %v66 = vpack.c.b16 %v61, %v60
    %v67 = vpack.c.b16 %v63, %v62
    %vm68 = vcmask 195584
    %v70 = vsel %vm68, %v64, 0
    %v73 = vsel %vm68, %v65, 0
    %v76 = vsel %vm68, %v66, 0
    %v79 = vsel %vm68, %v67, 0
    %v82 = vsel %vm68, %v31, 0
    %84 = vmatprep.subr.bf16.mxu0 0
    %85 = vmatpush1.bf16.xpose.msra.mxu0 0
    %86 = vmatprep.subr.bf16.mxu0 0
    %87 = vmatpush1.bf16.xpose.msra.mxu0 0
    %88 = vmatprep.subr.bf16.mxu0 0
    %89 = vmatpush1.bf16.xpose.msra.mxu0 0
    %90 = vmatprep.subr.bf16.mxu0 0
    %91 = vmatpush1.bf16.xpose.msra.mxu0 0
    %92 = vmatprep.subr.bf16.mxu0 0
    %93 = vmatpush1.bf16.xpose.msra.mxu0 0
    %94 = vmatprep.subr.bf16.mxu0 0
    %95 = vmatpush1.bf16.xpose.msra.mxu0 0
    %96 = vmatprep.subr.bf16.mxu0 0
    %97 = vmatpush1.bf16.xpose.msra.mxu0 0
    %98 = vmatprep.subr.bf16.mxu0 0
    %99 = vmatpush1.bf16.xpose.msra.mxu0 %v82
    %100 = vmatprep.subr.bf16.mxu0 0
    %101 = vmatpush2.bf16.xpose.msra.mxu0 0
    %102 = vmatprep.subr.bf16.mxu0 0
    %103 = vmatpush2.bf16.xpose.msra.mxu0 0
    %104 = vmatprep.subr.bf16.mxu0 0
    %105 = vmatpush2.bf16.xpose.msra.mxu0 0
    %106 = vmatprep.subr.bf16.mxu0 0
    %107 = vmatpush2.bf16.xpose.msra.mxu0 0
    %108 = vmatprep.subr.bf16.mxu0 0
    %109 = vmatpush2.bf16.xpose.msra.mxu0 0
    %110 = vmatprep.subr.bf16.mxu0 0
    %111 = vmatpush2.bf16.xpose.msra.mxu0 0
    %112 = vmatprep.subr.bf16.mxu0 0
    %113 = vmatpush2.bf16.xpose.msra.mxu0 0
    %114 = vmatprep.subr.bf16.mxu0 0
    %115 = vmatpush2.bf16.xpose.msra.mxu0 0
    %116 = vmatprep.mubr.bf16.mxu0 0
    %117 = vmatmul.mubr.bf16.gmra.mxu0 %v70
    %v118 = vpop.f32.mrf.mxu0
    %v119 = vadd.f32 0.0, %v118
    %v120 = vpop.f32.mrf.mxu0
    %v121 = vpop.f32.mrf.mxu0
    %v122 = vadd.f32 0.0, %v121
    %v123 = vpop.f32.mrf.mxu0
    %124 = vmatprep.mubr.bf16.mxu0 0
    %125 = vmatmul.mubr.bf16.gmra.mxu0 %v73
    %v126 = vpop.f32.mrf.mxu0
    %v127 = vadd.f32 0.0, %v126
    %v128 = vpop.f32.mrf.mxu0
    %v129 = vpop.f32.mrf.mxu0
    %v130 = vadd.f32 0.0, %v129
    %v131 = vpop.f32.mrf.mxu0
    %132 = vmatprep.mubr.bf16.mxu0 0
    %133 = vmatmul.mubr.bf16.gmra.mxu0 %v76
    %v134 = vpop.f32.mrf.mxu0
    %v135 = vadd.f32 0.0, %v134
    %v136 = vpop.f32.mrf.mxu0
    %v137 = vpop.f32.mrf.mxu0
    %v138 = vadd.f32 0.0, %v137
    %v139 = vpop.f32.mrf.mxu0
    %140 = vmatprep.mubr.bf16.mxu0 0
    %141 = vmatmul.mubr.bf16.gmra.mxu0 %v79
    %v142 = vpop.f32.mrf.mxu0
    %v143 = vadd.f32 0.0, %v142
    %v144 = vpop.f32.mrf.mxu0
    %v145 = vpop.f32.mrf.mxu0
    %v146 = vadd.f32 0.0, %v145
    %v147 = vpop.f32.mrf.mxu0
    %148 = vdwg.mxu0
    %v157 = vunpack.c.l.b16 %v32
    %v158 = vunpack.c.l.b16 %v33
    %v159 = vunpack.c.l.b16 %v34
    %v160 = vunpack.c.l.b16 %v35
    %v161 = vunpack.c.l.b16 %v36
    %v162 = vunpack.c.l.b16 %v37
    %v163 = vunpack.c.l.b16 %v38
    %v164 = vunpack.c.l.b16 %v39
    %v165 = vpack.c.b16 %v158, %v157
    %v166 = vpack.c.b16 %v160, %v159
    %v167 = vpack.c.b16 %v162, %v161
    %v168 = vpack.c.b16 %v164, %v163
    %vm169 = vcmask 64512
    %v171 = vsel %vm169, %v165, 0
    %v174 = vsel %vm169, %v166, 0
    %v177 = vsel %vm169, %v167, 0
    %v180 = vsel %vm169, %v168, 0
    %v183 = vsel %vm169, %v29, 0
    %185 = vmatprep.subr.bf16.mxu0 0
    %186 = vmatpush1.bf16.xpose.msra.mxu0 0
    %187 = vmatprep.subr.bf16.mxu0 0
    %188 = vmatpush1.bf16.xpose.msra.mxu0 0
    %189 = vmatprep.subr.bf16.mxu0 0
    %190 = vmatpush1.bf16.xpose.msra.mxu0 0
    %191 = vmatprep.subr.bf16.mxu0 0
    %192 = vmatpush1.bf16.xpose.msra.mxu0 0
    %193 = vmatprep.subr.bf16.mxu0 0
    %194 = vmatpush1.bf16.xpose.msra.mxu0 0
    %195 = vmatprep.subr.bf16.mxu0 0
    %196 = vmatpush1.bf16.xpose.msra.mxu0 0
    %197 = vmatprep.subr.bf16.mxu0 0
    %198 = vmatpush1.bf16.xpose.msra.mxu0 0
    %199 = vmatprep.subr.bf16.mxu0 0
    %200 = vmatpush1.bf16.xpose.msra.mxu0 %v183
    %201 = vmatprep.subr.bf16.mxu0 0
    %202 = vmatpush2.bf16.xpose.msra.mxu0 0
    %203 = vmatprep.subr.bf16.mxu0 0
    %204 = vmatpush2.bf16.xpose.msra.mxu0 0
    %205 = vmatprep.subr.bf16.mxu0 0
    %206 = vmatpush2.bf16.xpose.msra.mxu0 0
    %207 = vmatprep.subr.bf16.mxu0 0
    %208 = vmatpush2.bf16.xpose.msra.mxu0 0
    %209 = vmatprep.subr.bf16.mxu0 0
    %210 = vmatpush2.bf16.xpose.msra.mxu0 0
    %211 = vmatprep.subr.bf16.mxu0 0
    %212 = vmatpush2.bf16.xpose.msra.mxu0 0
    %213 = vmatprep.subr.bf16.mxu0 0
    %214 = vmatpush2.bf16.xpose.msra.mxu0 0
    %215 = vmatprep.subr.bf16.mxu0 0
    %216 = vmatpush2.bf16.xpose.msra.mxu0 0
    %217 = vmatprep.mubr.bf16.mxu0 0
    %218 = vmatmul.mubr.bf16.gmra.mxu0 %v171
    %v219 = vpop.f32.mrf.mxu0
    %v220 = vadd.f32 %v119, %v219
    %v221 = vpop.f32.mrf.mxu0
    %v222 = vpop.f32.mrf.mxu0
    %v223 = vadd.f32 %v122, %v222
    %v224 = vpop.f32.mrf.mxu0
    %225 = vmatprep.mubr.bf16.mxu0 0
    %226 = vmatmul.mubr.bf16.gmra.mxu0 %v174
    %v227 = vpop.f32.mrf.mxu0
    %v228 = vadd.f32 %v127, %v227
    %v229 = vpop.f32.mrf.mxu0
    %v230 = vpop.f32.mrf.mxu0
    %v231 = vadd.f32 %v130, %v230
    %v232 = vpop.f32.mrf.mxu0
    %233 = vmatprep.mubr.bf16.mxu0 0
    %234 = vmatmul.mubr.bf16.gmra.mxu0 %v177
    %v235 = vpop.f32.mrf.mxu0
    %v236 = vadd.f32 %v135, %v235
    %v237 = vpop.f32.mrf.mxu0
    %v238 = vpop.f32.mrf.mxu0
    %v239 = vadd.f32 %v138, %v238
    %v240 = vpop.f32.mrf.mxu0
    %241 = vmatprep.mubr.bf16.mxu0 0
    %242 = vmatmul.mubr.bf16.gmra.mxu0 %v180
    %v243 = vpop.f32.mrf.mxu0
    %v244 = vadd.f32 %v143, %v243
    %v245 = vpop.f32.mrf.mxu0
    %v246 = vpop.f32.mrf.mxu0
    %v247 = vadd.f32 %v146, %v246
    %v248 = vpop.f32.mrf.mxu0
    %249 = vdwg.mxu0
    %v250 = vld [vmem:[%s6] sm:$0xff]
    %v251 = vld [vmem:[%s6 + $0x8] sm:$0xff]
    %v252 = vld [vmem:[%s6 + $0x10] sm:$0xff]
    %v253 = vld [vmem:[%s6 + $0x18] sm:$0xff]
    %v254 = vld [vmem:[%s6 + $0x20] sm:$0xff]
    %v255 = vld [vmem:[%s6 + $0x28] sm:$0xff]
    %v256 = vld [vmem:[%s6 + $0x30] sm:$0xff]
    %v257 = vld [vmem:[%s6 + $0x38] sm:$0xff]
    %259 = vset.pattern.permute.xlu0 0
    %260 = vperm.xlu0 %259, %v250
    %v261 = vpop.permute.xlu0 %260
    %264 = vset.pattern.permute.xlu0 0
    %265 = vperm.xlu0 %264, %v251
    %v266 = vpop.permute.xlu0 %265
    %269 = vset.pattern.permute.xlu0 0
    %270 = vperm.xlu0 %269, %v252
    %v271 = vpop.permute.xlu0 %270
    %274 = vset.pattern.permute.xlu0 0
    %275 = vperm.xlu0 %274, %v253
    %v276 = vpop.permute.xlu0 %275
    %279 = vset.pattern.permute.xlu0 0
    %280 = vperm.xlu0 %279, %v254
    %v281 = vpop.permute.xlu0 %280
    %284 = vset.pattern.permute.xlu0 0
    %285 = vperm.xlu0 %284, %v255
    %v286 = vpop.permute.xlu0 %285
    %289 = vset.pattern.permute.xlu0 0
    %290 = vperm.xlu0 %289, %v256
    %v291 = vpop.permute.xlu0 %290
    %294 = vset.pattern.permute.xlu0 0
    %295 = vperm.xlu0 %294, %v257
    %v296 = vpop.permute.xlu0 %295
    %v298 = vadd.f32 %v220, %v261
    %v299 = vadd.f32 %v223, %v266
    %v300 = vadd.f32 %v228, %v271
    %v301 = vadd.f32 %v231, %v276
    %v302 = vadd.f32 %v236, %v281
    %v303 = vadd.f32 %v239, %v286
    %v304 = vadd.f32 %v244, %v291
    %v305 = vadd.f32 %v247, %v296
    %v306 = vmax.f32 %v298, 0.0
    %v307 = vmax.f32 %v299, 0.0
    %v308 = vmax.f32 %v300, 0.0
    %v309 = vmax.f32 %v301, 0.0
    %v310 = vmax.f32 %v302, 0.0
    %v311 = vmax.f32 %v303, 0.0
    %v312 = vmax.f32 %v304, 0.0
    %v313 = vmax.f32 %v305, 0.0
    %v314 = vpack.c.bf16 %v307, %v306
    %v315 = vpack.c.bf16 %v309, %v308
    %v316 = vpack.c.bf16 %v311, %v310
    %v317 = vpack.c.bf16 %v313, %v312
    %v318 = vld [vmem:[%s4] sm:$0xf]
    %v319 = vld [vmem:[%s4 + $0x4] sm:$0xf]
    %v320 = vld [vmem:[%s4 + $0x8] sm:$0xf]
    %v321 = vld [vmem:[%s4 + $0xc] sm:$0xf]
    %v322 = vld [vmem:[%s4 + $0x10] sm:$0xf]
    %v323 = vld [vmem:[%s4 + $0x14] sm:$0xf]
    %v324 = vld [vmem:[%s4 + $0x18] sm:$0xf]
    %v325 = vld [vmem:[%s4 + $0x1c] sm:$0xf]
    %326 = vset.pattern.permute.xlu0 1
    %327 = vperm.xlu0 %326, %v250
    %v328 = vpop.permute.xlu0 %327
    %330 = vset.pattern.permute.xlu0 1
    %331 = vperm.xlu0 %330, %v251
    %v332 = vpop.permute.xlu0 %331
    %334 = vset.pattern.permute.xlu0 1
    %335 = vperm.xlu0 %334, %v252
    %v336 = vpop.permute.xlu0 %335
    %338 = vset.pattern.permute.xlu0 1
    %339 = vperm.xlu0 %338, %v253
    %v340 = vpop.permute.xlu0 %339
    %342 = vset.pattern.permute.xlu0 1
    %343 = vperm.xlu0 %342, %v254
    %v344 = vpop.permute.xlu0 %343
    %346 = vset.pattern.permute.xlu0 1
    %347 = vperm.xlu0 %346, %v255
    %v348 = vpop.permute.xlu0 %347
    %350 = vset.pattern.permute.xlu0 1
    %351 = vperm.xlu0 %350, %v256
    %v352 = vpop.permute.xlu0 %351
    %354 = vset.pattern.permute.xlu0 1
    %355 = vperm.xlu0 %354, %v257
    %v356 = vpop.permute.xlu0 %355
    %v366 = vunpack.c.l.b16 %v318
    %v367 = vunpack.c.l.b16 %v319
    %v368 = vunpack.c.l.b16 %v320
    %v369 = vunpack.c.l.b16 %v321
    %v370 = vunpack.c.l.b16 %v322
    %v371 = vunpack.c.l.b16 %v323
    %v372 = vunpack.c.l.b16 %v324
    %v373 = vunpack.c.l.b16 %v325
    %v374 = vpack.c.b16 %v367, %v366
    %v375 = vpack.c.b16 %v369, %v368
    %v376 = vpack.c.b16 %v371, %v370
    %v377 = vpack.c.b16 %v373, %v372
    %vm378 = vcmask 523264
    %v380 = vsel %vm378, %v374, 0
    %v383 = vsel %vm378, %v375, 0
    %v386 = vsel %vm378, %v376, 0
    %v389 = vsel %vm378, %v377, 0
    %391 = vmatprep.subr.bf16.mxu0 0
    %392 = vmatpush1.bf16.msra.mxu0 0
    %393 = vmatprep.subr.bf16.mxu0 0
    %394 = vmatpush1.bf16.msra.mxu0 0
    %395 = vmatprep.subr.bf16.mxu0 0
    %396 = vmatpush1.bf16.msra.mxu0 0
    %397 = vmatprep.subr.bf16.mxu0 0
    %398 = vmatpush1.bf16.msra.mxu0 0
    %399 = vmatprep.subr.bf16.mxu0 0
    %400 = vmatpush1.bf16.msra.mxu0 %v317
    %401 = vmatprep.subr.bf16.mxu0 0
    %402 = vmatpush1.bf16.msra.mxu0 %v316
    %403 = vmatprep.subr.bf16.mxu0 0
    %404 = vmatpush1.bf16.msra.mxu0 %v315
    %405 = vmatprep.subr.bf16.mxu0 0
    %406 = vmatpush1.bf16.msra.mxu0 %v314
    %407 = vmatprep.subr.bf16.mxu0 0
    %408 = vmatpush2.bf16.msra.mxu0 0
    %409 = vmatprep.subr.bf16.mxu0 0
    %410 = vmatpush2.bf16.msra.mxu0 0
    %411 = vmatprep.subr.bf16.mxu0 0
    %412 = vmatpush2.bf16.msra.mxu0 0
    %413 = vmatprep.subr.bf16.mxu0 0
    %414 = vmatpush2.bf16.msra.mxu0 0
    %415 = vmatprep.subr.bf16.mxu0 0
    %416 = vmatpush2.bf16.msra.mxu0 0
    %417 = vmatprep.subr.bf16.mxu0 0
    %418 = vmatpush2.bf16.msra.mxu0 0
    %419 = vmatprep.subr.bf16.mxu0 0
    %420 = vmatpush2.bf16.msra.mxu0 0
    %421 = vmatprep.subr.bf16.mxu0 0
    %422 = vmatpush2.bf16.msra.mxu0 0
    %423 = vmatprep.mubr.bf16.mxu0 0
    %424 = vmatmul.mubr.bf16.gmra.mxu0 %v380
    %v425 = vpop.f32.mrf.mxu0
    %v426 = vadd.f32 %v328, %v425
    %v427 = vpop.f32.mrf.mxu0
    %v428 = vpop.f32.mrf.mxu0
    %v429 = vadd.f32 %v332, %v428
    %v430 = vpop.f32.mrf.mxu0
    %431 = vmatprep.mubr.bf16.mxu0 0
    %432 = vmatmul.mubr.bf16.gmra.mxu0 %v383
    %v433 = vpop.f32.mrf.mxu0
    %v434 = vadd.f32 %v336, %v433
    %v435 = vpop.f32.mrf.mxu0
    %v436 = vpop.f32.mrf.mxu0
    %v437 = vadd.f32 %v340, %v436
    %v438 = vpop.f32.mrf.mxu0
    %439 = vmatprep.mubr.bf16.mxu0 0
    %440 = vmatmul.mubr.bf16.gmra.mxu0 %v386
    %v441 = vpop.f32.mrf.mxu0
    %v442 = vadd.f32 %v344, %v441
    %v443 = vpop.f32.mrf.mxu0
    %v444 = vpop.f32.mrf.mxu0
    %v445 = vadd.f32 %v348, %v444
    %v446 = vpop.f32.mrf.mxu0
    %447 = vmatprep.mubr.bf16.mxu0 0
    %448 = vmatmul.mubr.bf16.gmra.mxu0 %v389
    %v449 = vpop.f32.mrf.mxu0
    %v450 = vadd.f32 %v352, %v449
    %v451 = vpop.f32.mrf.mxu0
    %v452 = vpop.f32.mrf.mxu0
    %v453 = vadd.f32 %v356, %v452
    %v454 = vpop.f32.mrf.mxu0
    %455 = vdwg.mxu0
    %v456 = vmax.f32 %v426, 0.0
    %v457 = vmax.f32 %v429, 0.0
    %v458 = vmax.f32 %v434, 0.0
    %v459 = vmax.f32 %v437, 0.0
    %v460 = vmax.f32 %v442, 0.0
    %v461 = vmax.f32 %v445, 0.0
    %v462 = vmax.f32 %v450, 0.0
    %v463 = vmax.f32 %v453, 0.0
    %v464 = vpack.c.bf16 %v457, %v456
    %v465 = vpack.c.bf16 %v459, %v458
    %v466 = vpack.c.bf16 %v461, %v460
    %v467 = vpack.c.bf16 %v463, %v462
    %v468 = vld [vmem:[%s5] sm:$0xf]
    %v469 = vld [vmem:[%s6] sm:$0xff]
    %471 = vset.pattern.permute.xlu0 2
    %472 = vperm.xlu0 %471, %v469
    %v473 = vpop.permute.xlu0 %472
    %v476 = vsel %vm378, %v468, 0
    %478 = vmatprep.subr.bf16.mxu0 0
    %479 = vmatpush1.bf16.msra.mxu0 0
    %480 = vmatprep.subr.bf16.mxu0 0
    %481 = vmatpush1.bf16.msra.mxu0 0
    %482 = vmatprep.subr.bf16.mxu0 0
    %483 = vmatpush1.bf16.msra.mxu0 0
    %484 = vmatprep.subr.bf16.mxu0 0
    %485 = vmatpush1.bf16.msra.mxu0 0
    %486 = vmatprep.subr.bf16.mxu0 0
    %487 = vmatpush1.bf16.msra.mxu0 %v467
    %488 = vmatprep.subr.bf16.mxu0 0
    %489 = vmatpush1.bf16.msra.mxu0 %v466
    %490 = vmatprep.subr.bf16.mxu0 0
    %491 = vmatpush1.bf16.msra.mxu0 %v465
    %492 = vmatprep.subr.bf16.mxu0 0
    %493 = vmatpush1.bf16.msra.mxu0 %v464
    %494 = vmatprep.subr.bf16.mxu0 0
    %495 = vmatpush2.bf16.msra.mxu0 0
    %496 = vmatprep.subr.bf16.mxu0 0
    %497 = vmatpush2.bf16.msra.mxu0 0
    %498 = vmatprep.subr.bf16.mxu0 0
    %499 = vmatpush2.bf16.msra.mxu0 0
    %500 = vmatprep.subr.bf16.mxu0 0
    %501 = vmatpush2.bf16.msra.mxu0 0
    %502 = vmatprep.subr.bf16.mxu0 0
    %503 = vmatpush2.bf16.msra.mxu0 0
    %504 = vmatprep.subr.bf16.mxu0 0
    %505 = vmatpush2.bf16.msra.mxu0 0
    %506 = vmatprep.subr.bf16.mxu0 0
    %507 = vmatpush2.bf16.msra.mxu0 0
    %508 = vmatprep.subr.bf16.mxu0 0
    %509 = vmatpush2.bf16.msra.mxu0 0
    %510 = vmatprep.mubr.bf16.mxu0 0
    %511 = vmatmul.mubr.bf16.gmra.mxu0 %v476
    %v512 = vpop.f32.mrf.mxu0
    %v513 = vadd.f32 %v473, %v512
    %v514 = vpop.f32.mrf.mxu0
    %v515 = vpop.f32.mrf.mxu0
    %v516 = vpop.f32.mrf.mxu0
    %517 = vdwg.mxu0
    %v519 = vrot.slane %v513, 1
    %v521 = vmin.f32 %v513, %v519
    %vm522 = vcmask 57344
    %523 = vst.msk [vmem:[#allocation2] sm:$0x1] %vm522, %v521
    // Predicated region
    $region30: #{gpo_critic_forward.1} parent=1 // pred_check
      _
    $region31: #{gpo_critic_forward.1} parent=1 // pred_check_branch
      %525 = sbr.rel (0) target = $region33
    $region32: #{gpo_critic_forward.1} parent=1 // pred_region
      %s527 = ssub.s32 16, 16
      %528 = vsyncadd [#allocation3], %s527
      %s530 = sshll.u32 [#allocation2], 4
      %s531 = int_to_ptr.vmem [resolvable:$true] %s530
      %533 = dma.vmem_to_hbm [thread:$0]  %s531, 16, %s7, [#allocation3]
    $region33: #{gpo_critic_forward.1} parent=1 // pred_fallthru
      _
    // Predicated region
    $region34: #{gpo_critic_forward.1} parent=1 // pred_check
      _
    $region35: #{gpo_critic_forward.1} parent=1 // pred_check_branch
      %535 = sbr.rel (0) target = $region37
    $region36: #{gpo_critic_forward.1} parent=1 // pred_region
      %536 = dma.done [#allocation3], 16
    $region37: #{gpo_critic_forward.1} parent=1 // pred_fallthru
      _
    %537 = vsyncpa [#allocation3], 1

</llo_original>
